<compile_context>
chip_gen: v7x
topology: tpu7x:2x2x1
jax: 0.10.0
libtpu: 0.0.40
codegen_flags: <defaults>
</compile_context>

<pallas_src>
import jax
import jax.numpy as jnp
import numpy as np
from jax.experimental import pallas as pl
from jax.experimental.pallas import tpu as pltpu

LANES = 128  # lane-dense width for [w*z | w] and the output (unmasked vst, full MXU pass)


# ---------------------------------------------------------------------------
# glue: matches torch F.pad(h, (0,0,1,1)); cat([h_pad[:-2], h, h_pad[2:]], 1)
# ---------------------------------------------------------------------------
def preprocess_h(h):
    h_pad = jnp.pad(h, ((1, 1), (0, 0)))
    return jnp.concatenate([h_pad[:-2], h, h_pad[2:]], axis=1)


# ---------------------------------------------------------------------------
# Stage 1: z = fc(h_), per-src softmax weight w, emit lane-dense [w*z | w | 0]
# ---------------------------------------------------------------------------
def _make_fc_kernel(out_dim):
    def fc_kernel(hcat_ref, waug_ref, wz_ref):
        # (N, 3*in_dim) bf16 @ (3*in_dim, 128) bf16 -> f32 accumulation   [MXU]
        # waug columns: [ W^T | W^T a_src | zeros ]  ->  z_aug = [ z | s_src | 0 ]
        # (a_dst is folded away: it cancels inside every per-dst softmax)
        z_aug = jnp.dot(hcat_ref[...], waug_ref[...],
                        preferred_element_type=jnp.float32)
        s_src = z_aug[:, out_dim:out_dim + 1]                       # (N, 1)
        m = jnp.max(s_src, axis=0, keepdims=True)                   # global max (stability)
        wgt = jnp.exp(s_src - m)                                    # per-src softmax weight
        lane = jax.lax.broadcasted_iota(jnp.int32, z_aug.shape, 1)
        # [ w*z (out_dim lanes) | w (1 lane) | zeros ] -- single bf16 operand
        wz = jnp.where(lane < out_dim, z_aug * wgt,
                       jnp.where(lane == out_dim, wgt, 0.0))
        wz_ref[...] = wz.astype(jnp.bfloat16)
    return fc_kernel


# ---------------------------------------------------------------------------
# Stage 2: out_tile = (adj_tile @ [w*z | w]) / (adj_tile @ w), src-tiled GEMM
# ---------------------------------------------------------------------------
def _make_attn_kernel(out_dim):
    def attn_kernel(adj_ref, wz_ref, out_ref, acc_ref):
        k = pl.program_id(1)

        @pl.when(k == 0)
        def _():
            acc_ref[...] = jnp.zeros_like(acc_ref)

        # int8 0/1 adjacency (4x less HBM than f32) -> bf16 exact for the MXU
        adj_bf = adj_ref[...].astype(jnp.bfloat16)
        acc_ref[...] += jnp.dot(adj_bf, wz_ref[...],
                                preferred_element_type=jnp.float32)

        @pl.when(k == pl.num_programs(1) - 1)
        def _():
            acc = acc_ref[...]
            # denominator column = sum_s adj[d,s] * w[s]  (>= w_self > 0: every
            # dst node is required to have in-degree >= 1, e.g. a self loop)
            denom = acc[:, out_dim:out_dim + 1]
            out_ref[...] = acc * pl.reciprocal(denom, approx=True)
    return attn_kernel


def _default_vmem_limit():
    # Per-generation VMEM budget: ~3/4 of physical capacity (96 MiB on the
    # 128 MiB v5e/v6e, 48 MiB on v7x's 64 MiB), with a conservative fallback.
    try:
        cap = getattr(pltpu.get_tpu_info(), "vmem_capacity_bytes", None)
        if cap:
            return int(min(cap * 3 // 4, 100 * 1024 * 1024))
    except Exception:
        pass
    return 48 * 1024 * 1024  # safe on every generation


def gat_forward(h, adj, w_fc, w_attn, *, tile_dst=None, tile_src=None,
                vmem_limit_bytes=None):
    """h: (N, in_dim) f32, adj: (N_dst, N_src) strictly 0/1 with in-degree >= 1,
    w_fc: (out_dim, 3*in_dim), w_attn: (1, 2*out_dim).  Returns (N, out_dim) f32."""
    n, in_dim = h.shape
    out_dim = w_fc.shape[0]
    assert adj.shape == (n, n)
    assert out_dim + 1 <= LANES, "lane-tiling across out_dim not implemented"

    if tile_dst is None:
        tile_dst = n if n <= 256 else 256
    if tile_src is None:
        tile_src = n if n <= 512 else 512
    assert n % tile_dst == 0 and n % tile_src == 0
    # int8 adjacency native layout tile is (32, 128): align blocks (or use full dim)
    assert tile_dst == n or tile_dst % 32 == 0
    assert tile_src == n or tile_src % 128 == 0

    if vmem_limit_bytes is None:
        vmem_limit_bytes = _default_vmem_limit()

    # --- glue / parameter prep (tiny, O(N*in_dim)) --------------------------
    h_cat = preprocess_h(h).astype(jnp.bfloat16)                # (N, 3*in_dim)
    a_src = w_attn[0, :out_dim]                                 # (out_dim,)
    # fold a_src into the fc GEMM: one extra output column gives s_src for free
    w_aug = jnp.zeros((3 * in_dim, LANES), jnp.float32)
    w_aug = w_aug.at[:, :out_dim].set(w_fc.T)
    w_aug = w_aug.at[:, out_dim].set(w_fc.T @ a_src)
    w_aug = w_aug.astype(jnp.bfloat16)
    adj_i8 = adj.astype(jnp.int8)                               # (N, N) 0/1

    # --- stage 1: fc + per-src weights (small, un-gridded) ------------------
    vmem_spec = pl.BlockSpec(memory_space=pltpu.MemorySpace.VMEM)
    wz = pl.pallas_call(
        _make_fc_kernel(out_dim),
        out_shape=jax.ShapeDtypeStruct((n, LANES), jnp.bfloat16),
        in_specs=[vmem_spec, vmem_spec],
        out_specs=vmem_spec,
    )(h_cat, w_aug)

    # --- stage 2: adjacency GEMM, 2-D grid (dst "parallel", src "arbitrary") --
    out_padded = pl.pallas_call(
        _make_attn_kernel(out_dim),
        out_shape=jax.ShapeDtypeStruct((n, LANES), jnp.float32),
        grid=(n // tile_dst, n // tile_src),
        in_specs=[
            pl.BlockSpec((tile_dst, tile_src), lambda i, k: (i, k)),  # adj tile (int8)
            pl.BlockSpec((tile_src, LANES), lambda i, k: (k, 0)),     # [w*z | w] tile
        ],
        out_specs=pl.BlockSpec((tile_dst, LANES), lambda i, k: (i, 0)),
        scratch_shapes=[pltpu.VMEM((tile_dst, LANES), jnp.float32)],  # f32 accumulator
        compiler_params=pltpu.CompilerParams(
            dimension_semantics=("parallel", "arbitrary"),  # megacore on dst tiles
            vmem_limit_bytes=vmem_limit_bytes,
        ),
    )(adj_i8, wz)

    return out_padded[:, :out_dim]


def gat_reference(h, adj, w_fc, w_attn):
    """Pure-JAX float32 reference of the module's math for verification."""
    out_dim = w_fc.shape[0]
    h_cat = preprocess_h(h)
    z = h_cat @ w_fc.T
    a_src = w_attn[0, :out_dim]
    a_dst = w_attn[0, out_dim:]
    e = (z @ a_dst)[:, None] + (z @ a_src)[None, :]
    mask = adj > 0
    e_m = jnp.where(mask, e, -1e30)
    p = jnp.where(mask, jnp.exp(e_m - e_m.max(axis=-1, keepdims=True)), 0.0)
    alpha = p / p.sum(axis=-1, keepdims=True)
    return alpha @ z


if __name__ == "__main__":
    N, in_dim, out_dim = 256, 8, 32

    key = jax.random.PRNGKey(0)
    k_h, k_fc, k_attn = jax.random.split(key, 3)

    # node features
    h = jax.random.normal(k_h, (N, in_dim), dtype=jnp.float32)

    # deterministic parameter init (PyTorch-Linear-like uniform, no bias)
    fan_fc = 3 * in_dim
    w_fc = jax.random.uniform(k_fc, (out_dim, 3 * in_dim), jnp.float32,
                              minval=-1.0 / np.sqrt(fan_fc),
                              maxval=1.0 / np.sqrt(fan_fc))
    fan_attn = 2 * out_dim
    w_attn = jax.random.uniform(k_attn, (1, 2 * out_dim), jnp.float32,
                                minval=-1.0 / np.sqrt(fan_attn),
                                maxval=1.0 / np.sqrt(fan_attn))

    # deterministic graph: path graph + self loops (in-degree >= 1 everywhere,
    # so every per-dst softmax denominator is strictly positive)
    idx = jnp.arange(N)
    adj = (jnp.abs(idx[:, None] - idx[None, :]) <= 1).astype(jnp.int8)

    # 2x2 grid of (128 dst, 128 src) tiles exercises the accumulator path
    out = gat_forward(h, adj, w_fc, w_attn, tile_dst=128, tile_src=128)
    out = jax.block_until_ready(out)

    ref = gat_reference(h, adj.astype(jnp.float32), w_fc, w_attn)
    # numeric contract: bf16 MXU GEMMs with f32 accumulation + approx reciprocal
    np.testing.assert_allclose(np.asarray(out), np.asarray(ref),
                               rtol=3e-2, atol=3e-2)

    print("KERNEL_OK")
</pallas_src>

<mosaic_0001>
module attributes {stable_mosaic.version = 11 : i64} {
  func.func @fc_kernel(%arg0: memref<256x24xbf16, #tpu.memory_space<vmem>>, %arg1: memref<24x128xbf16, #tpu.memory_space<vmem>>, %arg2: memref<256x128xbf16, #tpu.memory_space<vmem>>) attributes {dimension_semantics = [], scalar_prefetch = 0 : i64, scratch_operands = 0 : i64, tpu.core_type = #tpu.core_type<tc>} {
    %c0 = arith.constant 0 : index
    %c0_0 = arith.constant 0 : index
    %0 = vector.load %arg0[%c0, %c0_0] : memref<256x24xbf16, #tpu.memory_space<vmem>>, vector<256x24xbf16>
    %c0_1 = arith.constant 0 : index
    %c0_2 = arith.constant 0 : index
    %1 = vector.load %arg1[%c0_1, %c0_2] : memref<24x128xbf16, #tpu.memory_space<vmem>>, vector<24x128xbf16>
    %cst = arith.constant dense<0.000000e+00> : vector<256x128xf32>
    %2 = tpu.matmul %0, %1, %cst {dimension_numbers = #tpu.dot_dimension_numbers<[1], [0], [0], [1], [0, 0, 1, 1], [], []>} : vector<256x24xbf16>, vector<24x128xbf16>, vector<256x128xf32> -> vector<256x128xf32>
    %3 = vector.extract_strided_slice %2 {offsets = [0, 32], sizes = [256, 1], strides = [1, 1]} : vector<256x128xf32> to vector<256x1xf32>
    %cst_3 = arith.constant dense<0xFF800000> : vector<1xf32>
    %4 = vector.multi_reduction <maximumf>, %3, %cst_3 [0] : vector<256x1xf32> to vector<1xf32>
    %5 = vector.shape_cast %4 : vector<1xf32> to vector<1x1xf32>
    %6 = vector.broadcast %5 : vector<1x1xf32> to vector<256x1xf32>
    %7 = arith.subf %3, %6 : vector<256x1xf32>
    %8 = math.exp %7 : vector<256x1xf32>
    %9 = tpu.iota {dimensions = array<i32: 1>} : vector<256x128xi32>
    %c32_i32 = arith.constant 32 : i32
    %10 = vector.broadcast %c32_i32 : i32 to vector<256x128xi32>
    %11 = arith.cmpi slt, %9, %10 : vector<256x128xi32>
    %12 = vector.broadcast %8 : vector<256x1xf32> to vector<256x128xf32>
    %13 = arith.mulf %2, %12 : vector<256x128xf32>
    %c32_i32_4 = arith.constant 32 : i32
    %14 = vector.broadcast %c32_i32_4 : i32 to vector<256x128xi32>
    %15 = arith.cmpi eq, %9, %14 : vector<256x128xi32>
    %cst_5 = arith.constant 0.000000e+00 : f32
    %16 = vector.shape_cast %8 : vector<256x1xf32> to vector<256x1xf32>
    %17 = vector.broadcast %16 : vector<256x1xf32> to vector<256x128xf32>
    %18 = vector.broadcast %cst_5 : f32 to vector<256x128xf32>
    %19 = arith.select %15, %17, %18 : vector<256x128xi1>, vector<256x128xf32>
    %20 = arith.select %11, %13, %19 : vector<256x128xi1>, vector<256x128xf32>
    %21 = arith.truncf %20 : vector<256x128xf32> to vector<256x128xbf16>
    %c0_6 = arith.constant 0 : index
    %c0_7 = arith.constant 0 : index
    %22 = vector.load %arg2[%c0_6, %c0_7] : memref<256x128xbf16, #tpu.memory_space<vmem>>, vector<256x128xbf16>
    tpu.vector_store %arg2[%c0_6, %c0_7], %21 {strides = array<i32>} : memref<256x128xbf16, #tpu.memory_space<vmem>>, vector<256x128xbf16>,
    return
  }
}

</mosaic_0001>

<llo_original>
// kernel: tpu_custom_call.1
$region0: #{tpu_custom_call.1}
  #allocation0 [shape = 'u32[]', space=smem, size = 0x4, offset = 0x4, fixed_abs, tag = 'smem constant byte address 0x4 - core index']
  #allocation1 [shape = 'u32[144,128]{1,0:T(1,128)}', space=vmem, size = 0x12000, scoped, tag = 'internal scratch']
  %s0 = inlined_call_operand.vmem [shape: bf16[256,24], index: 0, kind: input, shape index: {}]
  %s1 = inlined_call_operand.vmem [shape: bf16[24,128], index: 1, kind: input, shape index: {}]
  %s2 = inlined_call_operand.hbm [shape: bf16[256,128], index: 2, kind: output, shape index: {}]
  %s3 = sld [smem:[#allocation0]]
  $region18: #{tpu_custom_call.1} parent=0
    _
  %s5 = ssub.s32 1, %s3
  %s6 = scalar_select 0, %s5, %s3
  $region1: #{tpu_custom_call.1} parent=0
    #allocation2 [shape = 'u8[65536]{0}', space=vmem, size = 0x10000, scoped, tag = 'output window, operand 0, single buffered']
    #allocation3 [shape = 's32[1]{0}', space=sflag, size = 0x4, scoped, tag = 'scoped memory for tpu_custom_call.1']
    %7 = vsyncpa [#allocation3], 0
    // Predicated region
    $region2: #{tpu_custom_call.1} parent=1 // pred_check
      _
    $region3: #{tpu_custom_call.1} parent=1 // pred_check_branch
      %9 = sbr.rel (0) target = $region5
    $region4: #{tpu_custom_call.1} parent=1 // pred_region
      _
    $region5: #{tpu_custom_call.1} parent=1 // pred_fallthru
      _
    // Predicated region
    $region6: #{tpu_custom_call.1} parent=1 // pred_check
      _
    $region7: #{tpu_custom_call.1} parent=1 // pred_check_branch
      %11 = sbr.rel (0) target = $region9
    $region8: #{tpu_custom_call.1} parent=1 // pred_region
      _
    $region9: #{tpu_custom_call.1} parent=1 // pred_fallthru
      _
    %v13 = vld [vmem:[%s0] sm:$0xf]
    %v14 = vld [vmem:[%s0 + $0x4] sm:$0xf]
    %v15 = vld [vmem:[%s0 + $0x8] sm:$0xf]
    %v16 = vld [vmem:[%s0 + $0xc] sm:$0xf]
    %v17 = vld [vmem:[%s0 + $0x10] sm:$0xf]
    %v18 = vld [vmem:[%s0 + $0x14] sm:$0xf]
    %v19 = vld [vmem:[%s0 + $0x18] sm:$0xf]
    %v20 = vld [vmem:[%s0 + $0x1c] sm:$0xf]
    %v21 = vld [vmem:[%s0 + $0x20] sm:$0xf]
    %v22 = vld [vmem:[%s0 + $0x24] sm:$0xf]
    %v23 = vld [vmem:[%s0 + $0x28] sm:$0xf]
    %v24 = vld [vmem:[%s0 + $0x2c] sm:$0xf]
    %v25 = vld [vmem:[%s0 + $0x30] sm:$0xf]
    %v26 = vld [vmem:[%s0 + $0x34] sm:$0xf]
    %v27 = vld [vmem:[%s0 + $0x38] sm:$0xf]
    %v28 = vld [vmem:[%s0 + $0x3c] sm:$0xf]
    %v29 = vld [vmem:[%s0 + $0x40] sm:$0xf]
    %v30 = vld [vmem:[%s0 + $0x44] sm:$0xf]
    %v31 = vld [vmem:[%s0 + $0x48] sm:$0xf]
    %v32 = vld [vmem:[%s0 + $0x4c] sm:$0xf]
    %v33 = vld [vmem:[%s0 + $0x50] sm:$0xf]
    %v34 = vld [vmem:[%s0 + $0x54] sm:$0xf]
    %v35 = vld [vmem:[%s0 + $0x58] sm:$0xf]
    %v36 = vld [vmem:[%s0 + $0x5c] sm:$0xf]
    %v37 = vld [vmem:[%s0 + $0x60] sm:$0xf]
    %v38 = vld [vmem:[%s0 + $0x64] sm:$0xf]
    %v39 = vld [vmem:[%s0 + $0x68] sm:$0xf]
    %v40 = vld [vmem:[%s0 + $0x6c] sm:$0xf]
    %v41 = vld [vmem:[%s0 + $0x70] sm:$0xf]
    %v42 = vld [vmem:[%s0 + $0x74] sm:$0xf]
    %v43 = vld [vmem:[%s0 + $0x78] sm:$0xf]
    %v44 = vld [vmem:[%s0 + $0x7c] sm:$0xf]
    %v45 = vld [vmem:[%s1] sm:$0xf]
    %v46 = vld [vmem:[%s1 + $0x4] sm:$0xf]
    %v47 = vld [vmem:[%s1 + $0x8] sm:$0xf]
    %v80 = vunpack.c.l.b16 %v13
    %v81 = vunpack.c.l.b16 %v14
    %v82 = vunpack.c.l.b16 %v15
    %v83 = vunpack.c.l.b16 %v16
    %v84 = vunpack.c.l.b16 %v17
    %v85 = vunpack.c.l.b16 %v18
    %v86 = vunpack.c.l.b16 %v19
    %v87 = vunpack.c.l.b16 %v20
    %v88 = vunpack.c.l.b16 %v21
    %v89 = vunpack.c.l.b16 %v22
    %v90 = vunpack.c.l.b16 %v23
    %v91 = vunpack.c.l.b16 %v24
    %v92 = vunpack.c.l.b16 %v25
    %v93 = vunpack.c.l.b16 %v26
    %v94 = vunpack.c.l.b16 %v27
    %v95 = vunpack.c.l.b16 %v28
    %v96 = vunpack.c.l.b16 %v29
    %v97 = vunpack.c.l.b16 %v30
    %v98 = vunpack.c.l.b16 %v31
    %v99 = vunpack.c.l.b16 %v32
    %v100 = vunpack.c.l.b16 %v33
    %v101 = vunpack.c.l.b16 %v34
    %v102 = vunpack.c.l.b16 %v35
    %v103 = vunpack.c.l.b16 %v36
    %v104 = vunpack.c.l.b16 %v37
    %v105 = vunpack.c.l.b16 %v38
    %v106 = vunpack.c.l.b16 %v39
    %v107 = vunpack.c.l.b16 %v40
    %v108 = vunpack.c.l.b16 %v41
    %v109 = vunpack.c.l.b16 %v42
    %v110 = vunpack.c.l.b16 %v43
    %v111 = vunpack.c.l.b16 %v44
    %v112 = vpack.c.b16 %v81, %v80
    %v113 = vpack.c.b16 %v83, %v82
    %v114 = vpack.c.b16 %v85, %v84
    %v115 = vpack.c.b16 %v87, %v86
    %v116 = vpack.c.b16 %v89, %v88
    %v117 = vpack.c.b16 %v91, %v90
    %v118 = vpack.c.b16 %v93, %v92
    %v119 = vpack.c.b16 %v95, %v94
    %v120 = vpack.c.b16 %v97, %v96
    %v121 = vpack.c.b16 %v99, %v98
    %v122 = vpack.c.b16 %v101, %v100
    %v123 = vpack.c.b16 %v103, %v102
    %v124 = vpack.c.b16 %v105, %v104
    %v125 = vpack.c.b16 %v107, %v106
    %v126 = vpack.c.b16 %v109, %v108
    %v127 = vpack.c.b16 %v111, %v110
    %v131 = vunpack.c.l.b16 %v45
    %v132 = vunpack.c.l.b16 %v46
    %v133 = vunpack.c.l.b16 %v47
    %v134 = vpack.c.b16 %v132, %v131
    %v135 = vpack.c.b16 %v133, %v133
    %vm137 = vcmask 195584
    %v139 = vsel %vm137, %v112, 0
    %v142 = vsel %vm137, %v113, 0
    %v145 = vsel %vm137, %v114, 0
    %v148 = vsel %vm137, %v115, 0
    %v151 = vsel %vm137, %v116, 0
    %v154 = vsel %vm137, %v117, 0
    %v157 = vsel %vm137, %v118, 0
    %v160 = vsel %vm137, %v119, 0
    %v163 = vsel %vm137, %v120, 0
    %v166 = vsel %vm137, %v121, 0
    %v169 = vsel %vm137, %v122, 0
    %v172 = vsel %vm137, %v123, 0
    %v175 = vsel %vm137, %v124, 0
    %v178 = vsel %vm137, %v125, 0
    %v181 = vsel %vm137, %v126, 0
    %v184 = vsel %vm137, %v127, 0
    %vm186 = vcmask 1043456
    %v188 = vsel %vm186, %v135, 0
    %190 = vmatprep.subr.bf16.mxu0 0
    %191 = vmatpush1.bf16.msra.mxu0 %v134
    %192 = vmatprep.subr.bf16.mxu0 0
    %193 = vmatpush1.bf16.msra.mxu0 %v188
    %194 = vmatprep.subr.bf16.mxu0 0
    %195 = vmatpush1.bf16.msra.mxu0 0
    %196 = vmatprep.subr.bf16.mxu0 0
    %197 = vmatpush1.bf16.msra.mxu0 0
    %198 = vmatprep.subr.bf16.mxu0 0
    %199 = vmatpush1.bf16.msra.mxu0 0
    %200 = vmatprep.subr.bf16.mxu0 0
    %201 = vmatpush1.bf16.msra.mxu0 0
    %202 = vmatprep.subr.bf16.mxu0 0
    %203 = vmatpush1.bf16.msra.mxu0 0
    %204 = vmatprep.subr.bf16.mxu0 0
    %205 = vmatpush1.bf16.msra.mxu0 0
    %206 = vmatprep.subr.bf16.mxu0 0
    %207 = vmatpush1.bf16.msra.mxu0 0
    %208 = vmatprep.subr.bf16.mxu0 0
    %209 = vmatpush1.bf16.msra.mxu0 0
    %210 = vmatprep.subr.bf16.mxu0 0
    %211 = vmatpush1.bf16.msra.mxu0 0
    %212 = vmatprep.subr.bf16.mxu0 0
    %213 = vmatpush1.bf16.msra.mxu0 0
    %214 = vmatprep.subr.bf16.mxu0 0
    %215 = vmatpush1.bf16.msra.mxu0 0
    %216 = vmatprep.subr.bf16.mxu0 0
    %217 = vmatpush1.bf16.msra.mxu0 0
    %218 = vmatprep.subr.bf16.mxu0 0
    %219 = vmatpush1.bf16.msra.mxu0 0
    %220 = vmatprep.subr.bf16.mxu0 0
    %221 = vmatpush1.bf16.msra.mxu0 0
    %222 = vmatprep.mubr.bf16.mxu0 0
    %223 = vmatmul.mubr.bf16.gmra.mrb[0].mxu0 %v139
    %v224 = vpop.f32.mrb[0].mxu0
    %v225 = vadd.f32 0.0, %v224
    %v226 = vpop.f32.mrb[0].mxu0
    %v227 = vpop.f32.mrb[0].mxu0
    %v228 = vadd.f32 0.0, %v227
    %v229 = vpop.f32.mrb[0].mxu0
    %230 = vmatprep.mubr.bf16.mxu0 0
    %231 = vmatmul.mubr.bf16.gmra.mrb[0].mxu0 %v142
    %v232 = vpop.f32.mrb[0].mxu0
    %v233 = vadd.f32 0.0, %v232
    %v234 = vpop.f32.mrb[0].mxu0
    %v235 = vpop.f32.mrb[0].mxu0
    %v236 = vadd.f32 0.0, %v235
    %v237 = vpop.f32.mrb[0].mxu0
    %238 = vmatprep.mubr.bf16.mxu0 0
    %239 = vmatmul.mubr.bf16.gmra.mrb[0].mxu0 %v145
    %v240 = vpop.f32.mrb[0].mxu0
    %v241 = vadd.f32 0.0, %v240
    %v242 = vpop.f32.mrb[0].mxu0
    %v243 = vpop.f32.mrb[0].mxu0
    %v244 = vadd.f32 0.0, %v243
    %v245 = vpop.f32.mrb[0].mxu0
    %246 = vmatprep.mubr.bf16.mxu0 0
    %247 = vmatmul.mubr.bf16.gmra.mrb[0].mxu0 %v148
    %v248 = vpop.f32.mrb[0].mxu0
    %v249 = vadd.f32 0.0, %v248
    %v250 = vpop.f32.mrb[0].mxu0
    %v251 = vpop.f32.mrb[0].mxu0
    %v252 = vadd.f32 0.0, %v251
    %v253 = vpop.f32.mrb[0].mxu0
    %254 = vmatprep.mubr.bf16.mxu0 0
    %255 = vmatmul.mubr.bf16.gmra.mrb[0].mxu0 %v151
    %v256 = vpop.f32.mrb[0].mxu0
    %v257 = vadd.f32 0.0, %v256
    %v258 = vpop.f32.mrb[0].mxu0
    %v259 = vpop.f32.mrb[0].mxu0
    %v260 = vadd.f32 0.0, %v259
    %v261 = vpop.f32.mrb[0].mxu0
    %262 = vmatprep.mubr.bf16.mxu0 0
    %263 = vmatmul.mubr.bf16.gmra.mrb[0].mxu0 %v154
    %v264 = vpop.f32.mrb[0].mxu0
    %v265 = vadd.f32 0.0, %v264
    %v266 = vpop.f32.mrb[0].mxu0
    %v267 = vpop.f32.mrb[0].mxu0
    %v268 = vadd.f32 0.0, %v267
    %v269 = vpop.f32.mrb[0].mxu0
    %270 = vmatprep.mubr.bf16.mxu0 0
    %271 = vmatmul.mubr.bf16.gmra.mrb[0].mxu0 %v157
    %v272 = vpop.f32.mrb[0].mxu0
    %v273 = vadd.f32 0.0, %v272
    %v274 = vpop.f32.mrb[0].mxu0
    %v275 = vpop.f32.mrb[0].mxu0
    %v276 = vadd.f32 0.0, %v275
    %v277 = vpop.f32.mrb[0].mxu0
    %278 = vmatprep.mubr.bf16.mxu0 0
    %279 = vmatmul.mubr.bf16.gmra.mrb[0].mxu0 %v160
    %v280 = vpop.f32.mrb[0].mxu0
    %v281 = vadd.f32 0.0, %v280
    %v282 = vpop.f32.mrb[0].mxu0
    %v283 = vpop.f32.mrb[0].mxu0
    %v284 = vadd.f32 0.0, %v283
    %v285 = vpop.f32.mrb[0].mxu0
    %286 = vmatprep.mubr.bf16.mxu0 0
    %287 = vmatmul.mubr.bf16.gmra.mrb[0].mxu0 %v163
    %v288 = vpop.f32.mrb[0].mxu0
    %v289 = vadd.f32 0.0, %v288
    %v290 = vpop.f32.mrb[0].mxu0
    %v291 = vpop.f32.mrb[0].mxu0
    %v292 = vadd.f32 0.0, %v291
    %v293 = vpop.f32.mrb[0].mxu0
    %294 = vmatprep.mubr.bf16.mxu0 0
    %295 = vmatmul.mubr.bf16.gmra.mrb[0].mxu0 %v166
    %v296 = vpop.f32.mrb[0].mxu0
    %v297 = vadd.f32 0.0, %v296
    %v298 = vpop.f32.mrb[0].mxu0
    %v299 = vpop.f32.mrb[0].mxu0
    %v300 = vadd.f32 0.0, %v299
    %v301 = vpop.f32.mrb[0].mxu0
    %302 = vmatprep.mubr.bf16.mxu0 0
    %303 = vmatmul.mubr.bf16.gmra.mrb[0].mxu0 %v169
    %v304 = vpop.f32.mrb[0].mxu0
    %v305 = vadd.f32 0.0, %v304
    %v306 = vpop.f32.mrb[0].mxu0
    %v307 = vpop.f32.mrb[0].mxu0
    %v308 = vadd.f32 0.0, %v307
    %v309 = vpop.f32.mrb[0].mxu0
    %310 = vmatprep.mubr.bf16.mxu0 0
    %311 = vmatmul.mubr.bf16.gmra.mrb[0].mxu0 %v172
    %v312 = vpop.f32.mrb[0].mxu0
    %v313 = vadd.f32 0.0, %v312
    %v314 = vpop.f32.mrb[0].mxu0
    %v315 = vpop.f32.mrb[0].mxu0
    %v316 = vadd.f32 0.0, %v315
    %v317 = vpop.f32.mrb[0].mxu0
    %318 = vmatprep.mubr.bf16.mxu0 0
    %319 = vmatmul.mubr.bf16.gmra.mrb[0].mxu0 %v175
    %v320 = vpop.f32.mrb[0].mxu0
    %v321 = vadd.f32 0.0, %v320
    %v322 = vpop.f32.mrb[0].mxu0
    %v323 = vpop.f32.mrb[0].mxu0
    %v324 = vadd.f32 0.0, %v323
    %v325 = vpop.f32.mrb[0].mxu0
    %326 = vmatprep.mubr.bf16.mxu0 0
    %327 = vmatmul.mubr.bf16.gmra.mrb[0].mxu0 %v178
    %v328 = vpop.f32.mrb[0].mxu0
    %v329 = vadd.f32 0.0, %v328
    %v330 = vpop.f32.mrb[0].mxu0
    %v331 = vpop.f32.mrb[0].mxu0
    %v332 = vadd.f32 0.0, %v331
    %v333 = vpop.f32.mrb[0].mxu0
    %334 = vmatprep.mubr.bf16.mxu0 0
    %335 = vmatmul.mubr.bf16.gmra.mrb[0].mxu0 %v181
    %v336 = vpop.f32.mrb[0].mxu0
    %v337 = vadd.f32 0.0, %v336
    %v338 = vpop.f32.mrb[0].mxu0
    %v339 = vpop.f32.mrb[0].mxu0
    %v340 = vadd.f32 0.0, %v339
    %v341 = vpop.f32.mrb[0].mxu0
    %342 = vmatprep.mubr.bf16.mxu0 0
    %343 = vmatmul.mubr.bf16.gmra.mrb[0].mxu0 %v184
    %v344 = vpop.f32.mrb[0].mxu0
    %v345 = vadd.f32 0.0, %v344
    %v346 = vpop.f32.mrb[0].mxu0
    %v347 = vpop.f32.mrb[0].mxu0
    %v348 = vadd.f32 0.0, %v347
    %v349 = vpop.f32.mrb[0].mxu0
    %350 = vdwg.mxu0
    %vm351 = vcmask 269568
    %v352 = vsel %vm351, %v225, -inf
    %v353 = vsel %vm351, %v228, -inf
    %v354 = vsel %vm351, %v233, -inf
    %v355 = vsel %vm351, %v236, -inf
    %v356 = vsel %vm351, %v241, -inf
    %v357 = vmax.f32 %v352, %v356
    %v358 = vsel %vm351, %v244, -inf
    %v359 = vmax.f32 %v353, %v358
    %v360 = vsel %vm351, %v249, -inf
    %v361 = vmax.f32 %v354, %v360
    %v362 = vsel %vm351, %v252, -inf
    %v363 = vmax.f32 %v355, %v362
    %v364 = vsel %vm351, %v257, -inf
    %v365 = vmax.f32 %v357, %v364
    %v366 = vsel %vm351, %v260, -inf
    %v367 = vmax.f32 %v359, %v366
    %v368 = vsel %vm351, %v265, -inf
    %v369 = vmax.f32 %v361, %v368
    %v370 = vsel %vm351, %v268, -inf
    %v371 = vmax.f32 %v363, %v370
    %v372 = vsel %vm351, %v273, -inf
    %v373 = vmax.f32 %v365, %v372
    %v374 = vsel %vm351, %v276, -inf
    %v375 = vmax.f32 %v367, %v374
    %v376 = vsel %vm351, %v281, -inf
    %v377 = vmax.f32 %v369, %v376
    %v378 = vsel %vm351, %v284, -inf
    %v379 = vmax.f32 %v371, %v378
    %v380 = vsel %vm351, %v289, -inf
    %v381 = vmax.f32 %v373, %v380
    %v382 = vsel %vm351, %v292, -inf
    %v383 = vmax.f32 %v375, %v382
    %v384 = vsel %vm351, %v297, -inf
    %v385 = vmax.f32 %v377, %v384
    %v386 = vsel %vm351, %v300, -inf
    %v387 = vmax.f32 %v379, %v386
    %v388 = vsel %vm351, %v305, -inf
    %v389 = vmax.f32 %v381, %v388
    %v390 = vsel %vm351, %v308, -inf
    %v391 = vmax.f32 %v383, %v390
    %v392 = vsel %vm351, %v313, -inf
    %v393 = vmax.f32 %v385, %v392
    %v394 = vsel %vm351, %v316, -inf
    %v395 = vmax.f32 %v387, %v394
    %v396 = vsel %vm351, %v321, -inf
    %v397 = vmax.f32 %v389, %v396
    %v398 = vsel %vm351, %v324, -inf
    %v399 = vmax.f32 %v391, %v398
    %v400 = vsel %vm351, %v329, -inf
    %v401 = vmax.f32 %v393, %v400
    %v402 = vsel %vm351, %v332, -inf
    %v403 = vmax.f32 %v395, %v402
    %v404 = vsel %vm351, %v337, -inf
    %v405 = vmax.f32 %v397, %v404
    %v406 = vsel %vm351, %v340, -inf
    %v407 = vmax.f32 %v399, %v406
    %v408 = vsel %vm351, %v345, -inf
    %v409 = vmax.f32 %v401, %v408
    %v410 = vsel %vm351, %v348, -inf
    %v411 = vmax.f32 %v403, %v410
    %v412 = vmax.f32 %v405, %v407
    %v413 = vmax.f32 %v409, %v411
    %v414 = vmax.f32 %v412, %v413
    %v415 = vrot.slane %v414, 4
    %v416 = vmax.f32 %v414, %v415
    %v417 = vrot.slane %v416, 2
    %v418 = vmax.f32 %v416, %v417
    %v419 = vrot.slane %v418, 1
    %v420 = vmax.f32 %v418, %v419
    %v421 = vsub.f32 %v225, %v420
    %v422 = vsub.f32 %v228, %v420
    %v423 = vsub.f32 %v233, %v420
    %v424 = vsub.f32 %v236, %v420
    %v425 = vsub.f32 %v241, %v420
    %v426 = vsub.f32 %v244, %v420
    %v427 = vsub.f32 %v249, %v420
    %v428 = vsub.f32 %v252, %v420
    %v429 = vsub.f32 %v257, %v420
    %v430 = vsub.f32 %v260, %v420
    %v431 = vsub.f32 %v265, %v420
    %v432 = vsub.f32 %v268, %v420
    %v433 = vsub.f32 %v273, %v420
    %v434 = vsub.f32 %v276, %v420
    %v435 = vsub.f32 %v281, %v420
    %v436 = vsub.f32 %v284, %v420
    %v437 = vsub.f32 %v289, %v420
    %v438 = vsub.f32 %v292, %v420
    %v439 = vsub.f32 %v297, %v420
    %v440 = vsub.f32 %v300, %v420
    %v441 = vsub.f32 %v305, %v420
    %v442 = vsub.f32 %v308, %v420
    %v443 = vsub.f32 %v313, %v420
    %v444 = vsub.f32 %v316, %v420
    %v445 = vsub.f32 %v321, %v420
    %v446 = vsub.f32 %v324, %v420
    %v447 = vsub.f32 %v329, %v420
    %v448 = vsub.f32 %v332, %v420
    %v449 = vsub.f32 %v337, %v420
    %v450 = vsub.f32 %v340, %v420
    %v451 = vsub.f32 %v345, %v420
    %v452 = vsub.f32 %v348, %v420
    %v453 = vmul.f32 %v421, 1.442695
    %v454 = vpow.pop %v453
    %v455 = vmul.f32 %v422, 1.442695
    %v456 = vpow.pop %v455
    %v457 = vmul.f32 %v423, 1.442695
    %v458 = vpow.pop %v457
    %v459 = vmul.f32 %v424, 1.442695
    %v460 = vpow.pop %v459
    %v461 = vmul.f32 %v425, 1.442695
    %v462 = vpow.pop %v461
    %v463 = vmul.f32 %v426, 1.442695
    %v464 = vpow.pop %v463
    %v465 = vmul.f32 %v427, 1.442695
    %v466 = vpow.pop %v465
    %v467 = vmul.f32 %v428, 1.442695
    %v468 = vpow.pop %v467
    %v469 = vmul.f32 %v429, 1.442695
    %v470 = vpow.pop %v469
    %v471 = vmul.f32 %v430, 1.442695
    %v472 = vpow.pop %v471
    %v473 = vmul.f32 %v431, 1.442695
    %v474 = vpow.pop %v473
    %v475 = vmul.f32 %v432, 1.442695
    %v476 = vpow.pop %v475
    %v477 = vmul.f32 %v433, 1.442695
    %v478 = vpow.pop %v477
    %v479 = vmul.f32 %v434, 1.442695
    %v480 = vpow.pop %v479
    %v481 = vmul.f32 %v435, 1.442695
    %v482 = vpow.pop %v481
    %v483 = vmul.f32 %v436, 1.442695
    %v484 = vpow.pop %v483
    %v485 = vmul.f32 %v437, 1.442695
    %v486 = vpow.pop %v485
    %v487 = vmul.f32 %v438, 1.442695
    %v488 = vpow.pop %v487
    %v489 = vmul.f32 %v439, 1.442695
    %v490 = vpow.pop %v489
    %v491 = vmul.f32 %v440, 1.442695
    %v492 = vpow.pop %v491
    %v493 = vmul.f32 %v441, 1.442695
    %v494 = vpow.pop %v493
    %v495 = vmul.f32 %v442, 1.442695
    %v496 = vpow.pop %v495
    %v497 = vmul.f32 %v443, 1.442695
    %v498 = vpow.pop %v497
    %v499 = vmul.f32 %v444, 1.442695
    %v500 = vpow.pop %v499
    %v501 = vmul.f32 %v445, 1.442695
    %v502 = vpow.pop %v501
    %v503 = vmul.f32 %v446, 1.442695
    %v504 = vpow.pop %v503
    %v505 = vmul.f32 %v447, 1.442695
    %v506 = vpow.pop %v505
    %v507 = vmul.f32 %v448, 1.442695
    %v508 = vpow.pop %v507
    %v509 = vmul.f32 %v449, 1.442695
    %v510 = vpow.pop %v509
    %v511 = vmul.f32 %v450, 1.442695
    %v512 = vpow.pop %v511
    %v513 = vmul.f32 %v451, 1.442695
    %v514 = vpow.pop %v513
    %v515 = vmul.f32 %v452, 1.442695
    %v516 = vpow.pop %v515
    %v517 = vlaneseq
    %v518 = vand.u32 %v517, 127
    %vm519 = vcmp.lt.s32.totalorder %v518, 32
    %521 = vset.pattern.permute.xlu0 32
    %522 = vperm.xlu0 %521, %v454
    %v523 = vpop.permute.xlu0 %522
    %526 = vset.pattern.permute.xlu0 32
    %527 = vperm.xlu0 %526, %v456
    %v528 = vpop.permute.xlu0 %527
    %531 = vset.pattern.permute.xlu0 32
    %532 = vperm.xlu0 %531, %v458
    %v533 = vpop.permute.xlu0 %532
    %536 = vset.pattern.permute.xlu0 32
    %537 = vperm.xlu0 %536, %v460
    %v538 = vpop.permute.xlu0 %537
    %541 = vset.pattern.permute.xlu0 32
    %542 = vperm.xlu0 %541, %v462
    %v543 = vpop.permute.xlu0 %542
    %546 = vset.pattern.permute.xlu0 32
    %547 = vperm.xlu0 %546, %v464
    %v548 = vpop.permute.xlu0 %547
    %551 = vset.pattern.permute.xlu0 32
    %552 = vperm.xlu0 %551, %v466
    %v553 = vpop.permute.xlu0 %552
    %556 = vset.pattern.permute.xlu0 32
    %557 = vperm.xlu0 %556, %v468
    %v558 = vpop.permute.xlu0 %557
    %561 = vset.pattern.permute.xlu0 32
    %562 = vperm.xlu0 %561, %v470
    %v563 = vpop.permute.xlu0 %562
    %566 = vset.pattern.permute.xlu0 32
    %567 = vperm.xlu0 %566, %v472
    %v568 = vpop.permute.xlu0 %567
    %571 = vset.pattern.permute.xlu0 32
    %572 = vperm.xlu0 %571, %v474
    %v573 = vpop.permute.xlu0 %572
    %576 = vset.pattern.permute.xlu0 32
    %577 = vperm.xlu0 %576, %v476
    %v578 = vpop.permute.xlu0 %577
    %581 = vset.pattern.permute.xlu0 32
    %582 = vperm.xlu0 %581, %v478
    %v583 = vpop.permute.xlu0 %582
    %586 = vset.pattern.permute.xlu0 32
    %587 = vperm.xlu0 %586, %v480
    %v588 = vpop.permute.xlu0 %587
    %591 = vset.pattern.permute.xlu0 32
    %592 = vperm.xlu0 %591, %v482
    %v593 = vpop.permute.xlu0 %592
    %596 = vset.pattern.permute.xlu0 32
    %597 = vperm.xlu0 %596, %v484
    %v598 = vpop.permute.xlu0 %597
    %601 = vset.pattern.permute.xlu0 32
    %602 = vperm.xlu0 %601, %v486
    %v603 = vpop.permute.xlu0 %602
    %606 = vset.pattern.permute.xlu0 32
    %607 = vperm.xlu0 %606, %v488
    %v608 = vpop.permute.xlu0 %607
    %611 = vset.pattern.permute.xlu0 32
    %612 = vperm.xlu0 %611, %v490
    %v613 = vpop.permute.xlu0 %612
    %616 = vset.pattern.permute.xlu0 32
    %617 = vperm.xlu0 %616, %v492
    %v618 = vpop.permute.xlu0 %617
    %621 = vset.pattern.permute.xlu0 32
    %622 = vperm.xlu0 %621, %v494
    %v623 = vpop.permute.xlu0 %622
    %626 = vset.pattern.permute.xlu0 32
    %627 = vperm.xlu0 %626, %v496
    %v628 = vpop.permute.xlu0 %627
    %631 = vset.pattern.permute.xlu0 32
    %632 = vperm.xlu0 %631, %v498
    %v633 = vpop.permute.xlu0 %632
    %636 = vset.pattern.permute.xlu0 32
    %637 = vperm.xlu0 %636, %v500
    %v638 = vpop.permute.xlu0 %637
    %641 = vset.pattern.permute.xlu0 32
    %642 = vperm.xlu0 %641, %v502
    %v643 = vpop.permute.xlu0 %642
    %646 = vset.pattern.permute.xlu0 32
    %647 = vperm.xlu0 %646, %v504
    %v648 = vpop.permute.xlu0 %647
    %651 = vset.pattern.permute.xlu0 32
    %652 = vperm.xlu0 %651, %v506
    %v653 = vpop.permute.xlu0 %652
    %656 = vset.pattern.permute.xlu0 32
    %657 = vperm.xlu0 %656, %v508
    %v658 = vpop.permute.xlu0 %657
    %661 = vset.pattern.permute.xlu0 32
    %662 = vperm.xlu0 %661, %v510
    %v663 = vpop.permute.xlu0 %662
    %666 = vset.pattern.permute.xlu0 32
    %667 = vperm.xlu0 %666, %v512
    %v668 = vpop.permute.xlu0 %667
    %671 = vset.pattern.permute.xlu0 32
    %672 = vperm.xlu0 %671, %v514
    %v673 = vpop.permute.xlu0 %672
    %676 = vset.pattern.permute.xlu0 32
    %677 = vperm.xlu0 %676, %v516
    %v678 = vpop.permute.xlu0 %677
    %v680 = vmul.f32 %v225, %v523
    %v681 = vmul.f32 %v228, %v528
    %v682 = vmul.f32 %v233, %v533
    %v683 = vmul.f32 %v236, %v538
    %v684 = vmul.f32 %v241, %v543
    %v685 = vmul.f32 %v244, %v548
    %v686 = vmul.f32 %v249, %v553
    %v687 = vmul.f32 %v252, %v558
    %v688 = vmul.f32 %v257, %v563
    %v689 = vmul.f32 %v260, %v568
    %v690 = vmul.f32 %v265, %v573
    %v691 = vmul.f32 %v268, %v578
    %v692 = vmul.f32 %v273, %v583
    %v693 = vmul.f32 %v276, %v588
    %v694 = vmul.f32 %v281, %v593
    %v695 = vmul.f32 %v284, %v598
    %v696 = vmul.f32 %v289, %v603
    %v697 = vmul.f32 %v292, %v608
    %v698 = vmul.f32 %v297, %v613
    %v699 = vmul.f32 %v300, %v618
    %v700 = vmul.f32 %v305, %v623
    %v701 = vmul.f32 %v308, %v628
    %v702 = vmul.f32 %v313, %v633
    %v703 = vmul.f32 %v316, %v638
    %v704 = vmul.f32 %v321, %v643
    %v705 = vmul.f32 %v324, %v648
    %v706 = vmul.f32 %v329, %v653
    %v707 = vmul.f32 %v332, %v658
    %v708 = vmul.f32 %v337, %v663
    %v709 = vmul.f32 %v340, %v668
    %v710 = vmul.f32 %v345, %v673
    %v711 = vmul.f32 %v348, %v678
    %vm712 = vcmp.eq.s32.totalorder %v518, 32
    %v713 = vsel %vm712, %v523, 0.0
    %v714 = vsel %vm712, %v528, 0.0
    %v715 = vsel %vm712, %v533, 0.0
    %v716 = vsel %vm712, %v538, 0.0
    %v717 = vsel %vm712, %v543, 0.0
    %v718 = vsel %vm712, %v548, 0.0
    %v719 = vsel %vm712, %v553, 0.0
    %v720 = vsel %vm712, %v558, 0.0
    %v721 = vsel %vm712, %v563, 0.0
    %v722 = vsel %vm712, %v568, 0.0
    %v723 = vsel %vm712, %v573, 0.0
    %v724 = vsel %vm712, %v578, 0.0
    %v725 = vsel %vm712, %v583, 0.0
    %v726 = vsel %vm712, %v588, 0.0
    %v727 = vsel %vm712, %v593, 0.0
    %v728 = vsel %vm712, %v598, 0.0
    %v729 = vsel %vm712, %v603, 0.0
    %v730 = vsel %vm712, %v608, 0.0
    %v731 = vsel %vm712, %v613, 0.0
    %v732 = vsel %vm712, %v618, 0.0
    %v733 = vsel %vm712, %v623, 0.0
    %v734 = vsel %vm712, %v628, 0.0
    %v735 = vsel %vm712, %v633, 0.0
    %v736 = vsel %vm712, %v638, 0.0
    %v737 = vsel %vm712, %v643, 0.0
    %v738 = vsel %vm712, %v648, 0.0
    %v739 = vsel %vm712, %v653, 0.0
    %v740 = vsel %vm712, %v658, 0.0
    %v741 = vsel %vm712, %v663, 0.0
    %v742 = vsel %vm712, %v668, 0.0
    %v743 = vsel %vm712, %v673, 0.0
    %v744 = vsel %vm712, %v678, 0.0
    %v745 = vsel %vm519, %v680, %v713
    %v746 = vsel %vm519, %v681, %v714
    %v747 = vsel %vm519, %v682, %v715
    %v748 = vsel %vm519, %v683, %v716
    %v749 = vsel %vm519, %v684, %v717
    %v750 = vsel %vm519, %v685, %v718
    %v751 = vsel %vm519, %v686, %v719
    %v752 = vsel %vm519, %v687, %v720
    %v753 = vsel %vm519, %v688, %v721
    %v754 = vsel %vm519, %v689, %v722
    %v755 = vsel %vm519, %v690, %v723
    %v756 = vsel %vm519, %v691, %v724
    %v757 = vsel %vm519, %v692, %v725
    %v758 = vsel %vm519, %v693, %v726
    %v759 = vsel %vm519, %v694, %v727
    %v760 = vsel %vm519, %v695, %v728
    %v761 = vsel %vm519, %v696, %v729
    %v762 = vsel %vm519, %v697, %v730
    %v763 = vsel %vm519, %v698, %v731
    %v764 = vsel %vm519, %v699, %v732
    %v765 = vsel %vm519, %v700, %v733
    %v766 = vsel %vm519, %v701, %v734
    %v767 = vsel %vm519, %v702, %v735
    %v768 = vsel %vm519, %v703, %v736
    %v769 = vsel %vm519, %v704, %v737
    %v770 = vsel %vm519, %v705, %v738
    %v771 = vsel %vm519, %v706, %v739
    %v772 = vsel %vm519, %v707, %v740
    %v773 = vsel %vm519, %v708, %v741
    %v774 = vsel %vm519, %v709, %v742
    %v775 = vsel %vm519, %v710, %v743
    %v776 = vsel %vm519, %v711, %v744
    %v777 = vpack.c.bf16 %v746, %v745
    %v778 = vpack.c.bf16 %v748, %v747
    %v779 = vpack.c.bf16 %v750, %v749
    %v780 = vpack.c.bf16 %v752, %v751
    %v781 = vpack.c.bf16 %v754, %v753
    %v782 = vpack.c.bf16 %v756, %v755
    %v783 = vpack.c.bf16 %v758, %v757
    %v784 = vpack.c.bf16 %v760, %v759
    %v785 = vpack.c.bf16 %v762, %v761
    %v786 = vpack.c.bf16 %v764, %v763
    %v787 = vpack.c.bf16 %v766, %v765
    %v788 = vpack.c.bf16 %v768, %v767
    %v789 = vpack.c.bf16 %v770, %v769
    %v790 = vpack.c.bf16 %v772, %v771
    %v791 = vpack.c.bf16 %v774, %v773
    %v792 = vpack.c.bf16 %v776, %v775
    %v809 = vunpack.c.l.b16 %v777
    %v810 = vunpack.c.h.b16 %v777
    %v811 = vunpack.c.l.b16 %v778
    %v812 = vunpack.c.h.b16 %v778
    %v813 = vunpack.c.l.b16 %v779
    %v814 = vunpack.c.h.b16 %v779
    %v815 = vunpack.c.l.b16 %v780
    %v816 = vunpack.c.h.b16 %v780
    %v817 = vunpack.c.l.b16 %v781
    %v818 = vunpack.c.h.b16 %v781
    %v819 = vunpack.c.l.b16 %v782
    %v820 = vunpack.c.h.b16 %v782
    %v821 = vunpack.c.l.b16 %v783
    %v822 = vunpack.c.h.b16 %v783
    %v823 = vunpack.c.l.b16 %v784
    %v824 = vunpack.c.h.b16 %v784
    %v825 = vunpack.c.l.b16 %v785
    %v826 = vunpack.c.h.b16 %v785
    %v827 = vunpack.c.l.b16 %v786
    %v828 = vunpack.c.h.b16 %v786
    %v829 = vunpack.c.l.b16 %v787
    %v830 = vunpack.c.h.b16 %v787
    %v831 = vunpack.c.l.b16 %v788
    %v832 = vunpack.c.h.b16 %v788
    %v833 = vunpack.c.l.b16 %v789
    %v834 = vunpack.c.h.b16 %v789
    %v835 = vunpack.c.l.b16 %v790
    %v836 = vunpack.c.h.b16 %v790
    %v837 = vunpack.c.l.b16 %v791
    %v838 = vunpack.c.h.b16 %v791
    %v839 = vunpack.c.l.b16 %v792
    %v840 = vunpack.c.h.b16 %v792
    %v841 = vpack.c.b16 %v809, %v809
    %v842 = vpack.c.b16 %v810, %v810
    %v843 = vpack.c.b16 %v811, %v811
    %v844 = vpack.c.b16 %v812, %v812
    %v845 = vpack.c.b16 %v813, %v813
    %v846 = vpack.c.b16 %v814, %v814
    %v847 = vpack.c.b16 %v815, %v815
    %v848 = vpack.c.b16 %v816, %v816
    %v849 = vpack.c.b16 %v817, %v817
    %v850 = vpack.c.b16 %v818, %v818
    %v851 = vpack.c.b16 %v819, %v819
    %v852 = vpack.c.b16 %v820, %v820
    %v853 = vpack.c.b16 %v821, %v821
    %v854 = vpack.c.b16 %v822, %v822
    %v855 = vpack.c.b16 %v823, %v823
    %v856 = vpack.c.b16 %v824, %v824
    %v857 = vpack.c.b16 %v825, %v825
    %v858 = vpack.c.b16 %v826, %v826
    %v859 = vpack.c.b16 %v827, %v827
    %v860 = vpack.c.b16 %v828, %v828
    %v861 = vpack.c.b16 %v829, %v829
    %v862 = vpack.c.b16 %v830, %v830
    %v863 = vpack.c.b16 %v831, %v831
    %v864 = vpack.c.b16 %v832, %v832
    %v865 = vpack.c.b16 %v833, %v833
    %v866 = vpack.c.b16 %v834, %v834
    %v867 = vpack.c.b16 %v835, %v835
    %v868 = vpack.c.b16 %v836, %v836
    %v869 = vpack.c.b16 %v837, %v837
    %v870 = vpack.c.b16 %v838, %v838
    %v871 = vpack.c.b16 %v839, %v839
    %v872 = vpack.c.b16 %v840, %v840
    %905 = vst [vmem:[#allocation2] sm:$0xf] %v841
    %906 = vst [vmem:[#allocation2 + $0x4] sm:$0xf] %v842
    %907 = vst [vmem:[#allocation2 + $0x8] sm:$0xf] %v843
    %908 = vst [vmem:[#allocation2 + $0xc] sm:$0xf] %v844
    %909 = vst [vmem:[#allocation2 + $0x10] sm:$0xf] %v845
    %910 = vst [vmem:[#allocation2 + $0x14] sm:$0xf] %v846
    %911 = vst [vmem:[#allocation2 + $0x18] sm:$0xf] %v847
    %912 = vst [vmem:[#allocation2 + $0x1c] sm:$0xf] %v848
    %913 = vst [vmem:[#allocation2 + $0x20] sm:$0xf] %v849
    %914 = vst [vmem:[#allocation2 + $0x24] sm:$0xf] %v850
    %915 = vst [vmem:[#allocation2 + $0x28] sm:$0xf] %v851
    %916 = vst [vmem:[#allocation2 + $0x2c] sm:$0xf] %v852
    %917 = vst [vmem:[#allocation2 + $0x30] sm:$0xf] %v853
    %918 = vst [vmem:[#allocation2 + $0x34] sm:$0xf] %v854
    %919 = vst [vmem:[#allocation2 + $0x38] sm:$0xf] %v855
    %920 = vst [vmem:[#allocation2 + $0x3c] sm:$0xf] %v856
    %921 = vst [vmem:[#allocation2 + $0x40] sm:$0xf] %v857
    %922 = vst [vmem:[#allocation2 + $0x44] sm:$0xf] %v858
    %923 = vst [vmem:[#allocation2 + $0x48] sm:$0xf] %v859
    %924 = vst [vmem:[#allocation2 + $0x4c] sm:$0xf] %v860
    %925 = vst [vmem:[#allocation2 + $0x50] sm:$0xf] %v861
    %926 = vst [vmem:[#allocation2 + $0x54] sm:$0xf] %v862
    %927 = vst [vmem:[#allocation2 + $0x58] sm:$0xf] %v863
    %928 = vst [vmem:[#allocation2 + $0x5c] sm:$0xf] %v864
    %929 = vst [vmem:[#allocation2 + $0x60] sm:$0xf] %v865
    %930 = vst [vmem:[#allocation2 + $0x64] sm:$0xf] %v866
    %931 = vst [vmem:[#allocation2 + $0x68] sm:$0xf] %v867
    %932 = vst [vmem:[#allocation2 + $0x6c] sm:$0xf] %v868
    %933 = vst [vmem:[#allocation2 + $0x70] sm:$0xf] %v869
    %934 = vst [vmem:[#allocation2 + $0x74] sm:$0xf] %v870
    %935 = vst [vmem:[#allocation2 + $0x78] sm:$0xf] %v871
    %936 = vst [vmem:[#allocation2 + $0x7c] sm:$0xf] %v872
    // Predicated region
    $region10: #{tpu_custom_call.1} parent=1 // pred_check
      _
    $region11: #{tpu_custom_call.1} parent=1 // pred_check_branch
      %938 = sbr.rel (0) target = $region13
    $region12: #{tpu_custom_call.1} parent=1 // pred_region
      %s940 = ssub.s32 2048, 2048
      %941 = vsyncadd [#allocation3], %s940
      %s942 = sshll.u32 [#allocation2], 4
      %s943 = int_to_ptr.vmem [resolvable:$true] %s942
      %948 = dma.vmem_to_hbm [thread:$0]  %s943, 2048, %s2, [#allocation3], 64, 64, 4
    $region13: #{tpu_custom_call.1} parent=1 // pred_fallthru
      _
    // Predicated region
    $region14: #{tpu_custom_call.1} parent=1 // pred_check
      _
    $region15: #{tpu_custom_call.1} parent=1 // pred_check_branch
      %950 = sbr.rel (0) target = $region17
    $region16: #{tpu_custom_call.1} parent=1 // pred_region
      %951 = dma.done [#allocation3], 2048
    $region17: #{tpu_custom_call.1} parent=1 // pred_fallthru
      _
    %952 = vsyncpa [#allocation3], 1

</llo_original>
